<compile_context>
chip_gen: v5e
topology: v5e:2x2
jax: 0.10.0
libtpu: 0.0.40
codegen_flags: <defaults>
</compile_context>

<pallas_src>
import jax
import jax.numpy as jnp
from jax.experimental import pallas as pl
from jax.experimental.pallas import tpu as pltpu

_LANE = 128        # lane alignment for all feature dims
_BN_EPS = 1e-5


def _round_up(n, m):
    return ((n + m - 1) // m) * m


def _pad2(a, rows, cols):
    return jnp.pad(a, ((0, rows - a.shape[0]), (0, cols - a.shape[1])))


def _pick_batch_tile(batch):
    """Batch rows per grid step: fill the MXU for big B, don't pad small B 8x."""
    if batch >= 512:
        tb = 256                      # fill v6e/v7x 256-wide MXU, halve step overhead
    elif batch >= 256:
        tb = 128
    else:
        tb = _round_up(batch, 16)     # 16 = bf16 sublane pack
    # Give the v7x megacore ("parallel" batch axis) at least 2 grid steps if possible.
    if _round_up(batch, tb) // tb < 2 and tb >= 32:
        tb = _round_up(tb // 2, 16)
    return tb


def _vmem_cap_bytes():
    """Physical VMEM capacity (per core) with a conservative fallback."""
    try:
        cap = getattr(pltpu.get_tpu_info(), "vmem_capacity_bytes", None)
        if cap:
            return int(cap)
    except Exception:
        pass
    return 64 * 2 ** 20               # v7x per-core VMEM (smallest current generation)


# ----------------------------------------------------------------------------- kernel
def _mlp_kernel(x_ref,
                w1_ref, b1_ref,
                w2_ref, b2_ref,
                w3_ref, b3_ref,
                wo_ref, bo_ref,
                out_ref):
    """3 x (Linear[BN-folded] + LeakyReLU) + Linear + Sigmoid on one batch tile."""

    def hidden_layer(h_bf16, w_ref, b_ref):
        # bf16 MXU inputs, f32 accumulation; bias + LeakyReLU epilogue in f32.
        y = jnp.dot(h_bf16, w_ref[...], preferred_element_type=jnp.float32) + b_ref[...]
        y = jnp.maximum(y, 0.1 * y)          # LeakyReLU(0.1); Dropout = identity (eval)
        return y.astype(jnp.bfloat16)

    h = hidden_layer(x_ref[...], w1_ref, b1_ref)
    h = hidden_layer(h, w2_ref, b2_ref)
    h = hidden_layer(h, w3_ref, b3_ref)

    logits = jnp.dot(h, wo_ref[...], preferred_element_type=jnp.float32) + bo_ref[...]
    out_ref[...] = jax.nn.sigmoid(logits).astype(out_ref.dtype)


# ----------------------------------------------------------------------------- params
def fold_params(params, eps=_BN_EPS, lane=_LANE):
    """Fold BatchNorm1d (running stats) into the preceding Linear, cast weights to
    bf16 (biases stay f32) and pad everything to lane multiples ONCE."""
    in_size, hidden = params["w1"].shape
    num_classes = params["wo"].shape[1]
    in_p = _round_up(in_size, lane)
    hid_p = _round_up(hidden, lane)
    cls_p = _round_up(num_classes, lane)

    folded = {"dims": (in_size, hidden, num_classes),
              "padded_dims": (in_p, hid_p, cls_p)}
    fan = {"1": (in_p, hid_p), "2": (hid_p, hid_p), "3": (hid_p, hid_p)}
    for i in ("1", "2", "3"):
        # Fold arithmetic in f32; only the final weight is cast to bf16.
        scale = params["gamma" + i] / jnp.sqrt(params["rvar" + i] + eps)   # (1, H)
        shift = params["beta" + i] - params["rmean" + i] * scale           # (1, H)
        w = (params["w" + i] * scale).astype(jnp.bfloat16)                 # per-output-col scale
        b = (params["b" + i] * scale + shift).astype(jnp.float32)
        rows, cols = fan[i]
        folded["w" + i] = _pad2(w, rows, cols)
        folded["b" + i] = _pad2(b, 1, cols)
    folded["wo"] = _pad2(params["wo"].astype(jnp.bfloat16), hid_p, cls_p)
    folded["bo"] = _pad2(params["bo"].astype(jnp.float32), 1, cls_p)
    return folded


# ----------------------------------------------------------------------------- wrapper
def multimodal_classification_forward(x, folded, out_dtype=jnp.float32):
    """x: (B, input_size) float.  folded: output of fold_params (pre-padded).
    out_dtype=jnp.bfloat16 halves store traffic on v5e if the consumer tolerates it."""
    in_size, _, num_classes = folded["dims"]
    in_p, hid_p, cls_p = folded["padded_dims"]
    batch = x.shape[0]

    tb = _pick_batch_tile(batch)
    batch_p = _round_up(batch, tb)
    grid = (batch_p // tb,)

    # bf16 input: halves per-step x DMA; zero padding is exact (padded input cols hit
    # zero weight rows, padded hidden/class cols carry zero weights+bias, padded batch
    # rows are sliced off at the end).
    xp = _pad2(x.astype(jnp.bfloat16), batch_p, in_p)

    # Scheduler hint.
    flops = 2 * batch_p * (in_p * hid_p + 2 * hid_p * hid_p + hid_p * cls_p)
    weights = (folded["w1"], folded["w2"], folded["w3"], folded["wo"])
    biases = (folded["b1"], folded["b2"], folded["b3"], folded["bo"])
    bytes_accessed = (xp.size * 2 + batch_p * cls_p * jnp.dtype(out_dtype).itemsize
                      + sum(int(w.size) * 2 for w in weights)
                      + sum(int(b.size) * 4 for b in biases))
    cost = pl.CostEstimate(flops=flops, transcendentals=batch_p * cls_p,
                           bytes_accessed=bytes_accessed)

    # VMEM budget: resident params + double-buffered x/out tiles + activation temps,
    # clamped below the physical per-core VMEM (v7x has only 64 MiB total).
    param_bytes = sum(int(a.size) * a.dtype.itemsize for a in weights + biases)
    io_bytes = 2 * tb * (in_p * 2 + cls_p * jnp.dtype(out_dtype).itemsize)
    act_bytes = 2 * tb * hid_p * 4
    need = param_bytes + io_bytes + act_bytes
    vmem_limit = int(min(max(32 * 2 ** 20, 2 * need), (_vmem_cap_bytes() * 3) // 4))

    def _make_call(single_buffer_weights):
        kw = {"pipeline_mode": pl.Buffered(1)} if single_buffer_weights else {}

        def resident(shape):
            # Same block index every grid step -> stays resident in VMEM (no re-DMA);
            # single-buffered to halve the resident-weight footprint on v7x.
            return pl.BlockSpec(shape, lambda i: (0, 0), **kw)

        in_specs = [
            pl.BlockSpec((tb, in_p), lambda i: (i, 0)),     # x: tiled over batch
            resident((in_p, hid_p)), resident((1, hid_p)),  # layer 1
            resident((hid_p, hid_p)), resident((1, hid_p)), # layer 2
            resident((hid_p, hid_p)), resident((1, hid_p)), # layer 3
            resident((hid_p, cls_p)), resident((1, cls_p)), # output layer
        ]
        out_specs = pl.BlockSpec((tb, cls_p), lambda i: (i, 0))

        return pl.pallas_call(
            _mlp_kernel,
            out_shape=jax.ShapeDtypeStruct((batch_p, cls_p), out_dtype),
            grid=grid,
            in_specs=in_specs,
            out_specs=out_specs,
            compiler_params=pltpu.CompilerParams(
                dimension_semantics=("parallel",),
                vmem_limit_bytes=vmem_limit),
            cost_estimate=cost,
        )

    args = (xp, folded["w1"], folded["b1"], folded["w2"], folded["b2"],
            folded["w3"], folded["b3"], folded["wo"], folded["bo"])
    try:
        out_p = _make_call(True)(*args)
    except Exception:
        # Fallback: default (double) buffering if pipeline_mode/Buffered(1) is rejected.
        out_p = _make_call(False)(*args)

    return out_p[:batch, :num_classes]


# ----------------------------------------------------------------------------- reference
def init_params(key, input_size, hidden_size, num_classes):
    """Synthetic PyTorch-style params: Linear weights stored (in, out); BN stats non-trivial."""
    keys = jax.random.split(key, 20)

    def linear(kw, kb, fan_in, fan_out):
        lim = 1.0 / jnp.sqrt(fan_in)
        w = jax.random.uniform(kw, (fan_in, fan_out), jnp.float32, -lim, lim)
        b = jax.random.uniform(kb, (1, fan_out), jnp.float32, -lim, lim)
        return w, b

    params = {}
    dims = [(input_size, hidden_size), (hidden_size, hidden_size), (hidden_size, hidden_size)]
    for idx, (fi, fo) in enumerate(dims):
        i = str(idx + 1)
        params["w" + i], params["b" + i] = linear(keys[4 * idx], keys[4 * idx + 1], fi, fo)
        params["gamma" + i] = jax.random.uniform(keys[4 * idx + 2], (1, fo), jnp.float32, 0.5, 1.5)
        params["beta" + i] = 0.1 * jax.random.normal(keys[4 * idx + 3], (1, fo), jnp.float32)
        params["rmean" + i] = 0.1 * jax.random.normal(keys[12 + idx], (1, fo), jnp.float32)
        params["rvar" + i] = jax.random.uniform(keys[15 + idx], (1, fo), jnp.float32, 0.5, 1.5)
    params["wo"], params["bo"] = linear(keys[18], keys[19], hidden_size, num_classes)
    return params


def reference_forward(x, params, eps=_BN_EPS):
    """Pure-JAX f32 reference mirroring the PyTorch eval-mode forward (unfolded BN)."""
    h = x
    for i in ("1", "2", "3"):
        h = h @ params["w" + i] + params["b" + i]
        h = (h - params["rmean" + i]) / jnp.sqrt(params["rvar" + i] + eps)
        h = h * params["gamma" + i] + params["beta" + i]
        h = jnp.where(h > 0, h, 0.1 * h)
    logits = h @ params["wo"] + params["bo"]
    return jax.nn.sigmoid(logits)


if __name__ == "__main__":
    # Small shapes consistent with the module's forward: x is (batch, input_size).
    batch, input_size, hidden_size, num_classes = 16, 48, 64, 10

    key = jax.random.PRNGKey(0)
    kx, kp = jax.random.split(key)
    x = jax.random.normal(kx, (batch, input_size), jnp.float32)
    params = init_params(kp, input_size, hidden_size, num_classes)
    folded = fold_params(params)   # one-time: BN fold + bf16 cast + lane padding

    out = multimodal_classification_forward(x, folded)
    out = jax.block_until_ready(out)

    ref = reference_forward(x, params)
    assert out.shape == (batch, num_classes)
    # bf16 activations/weights on the MXU -> loosened tolerance vs the full-f32 reference.
    assert jnp.max(jnp.abs(out - ref)) < 5e-2, "mismatch vs JAX reference"

    print("KERNEL_OK")
</pallas_src>

<mosaic_0001>
module attributes {stable_mosaic.version = 11 : i64} {
  func.func @_mlp_kernel(%arg0: i32, %arg1: memref<16x128xbf16, #tpu.memory_space<vmem>>, %arg2: memref<128x128xbf16, #tpu.memory_space<vmem>>, %arg3: memref<1x128xf32, #tpu.memory_space<vmem>>, %arg4: memref<128x128xbf16, #tpu.memory_space<vmem>>, %arg5: memref<1x128xf32, #tpu.memory_space<vmem>>, %arg6: memref<128x128xbf16, #tpu.memory_space<vmem>>, %arg7: memref<1x128xf32, #tpu.memory_space<vmem>>, %arg8: memref<128x128xbf16, #tpu.memory_space<vmem>>, %arg9: memref<1x128xf32, #tpu.memory_space<vmem>>, %arg10: memref<16x128xf32, #tpu.memory_space<vmem>>) attributes {dimension_semantics = [#tpu.dimension_semantics<parallel>], iteration_bounds = array<i64: 1>, scalar_prefetch = 0 : i64, scratch_operands = 0 : i64, tpu.core_type = #tpu.core_type<tc>, window_params = [{transform_indices = @transform_0, window_bounds = array<i64: 16, 128>}, {pipeline_mode = #tpu.pipeline_mode<synchronous>, transform_indices = @transform_1, window_bounds = array<i64: 128, 128>}, {pipeline_mode = #tpu.pipeline_mode<synchronous>, transform_indices = @transform_2, window_bounds = array<i64: 1, 128>}, {pipeline_mode = #tpu.pipeline_mode<synchronous>, transform_indices = @transform_3, window_bounds = array<i64: 128, 128>}, {pipeline_mode = #tpu.pipeline_mode<synchronous>, transform_indices = @transform_4, window_bounds = array<i64: 1, 128>}, {pipeline_mode = #tpu.pipeline_mode<synchronous>, transform_indices = @transform_5, window_bounds = array<i64: 128, 128>}, {pipeline_mode = #tpu.pipeline_mode<synchronous>, transform_indices = @transform_6, window_bounds = array<i64: 1, 128>}, {pipeline_mode = #tpu.pipeline_mode<synchronous>, transform_indices = @transform_7, window_bounds = array<i64: 128, 128>}, {pipeline_mode = #tpu.pipeline_mode<synchronous>, transform_indices = @transform_8, window_bounds = array<i64: 1, 128>}, {transform_indices = @transform_9, window_bounds = array<i64: 16, 128>}]} {
    %c0 = arith.constant 0 : index
    %c0_0 = arith.constant 0 : index
    %0 = vector.load %arg1[%c0, %c0_0] : memref<16x128xbf16, #tpu.memory_space<vmem>>, vector<16x128xbf16>
    %c0_1 = arith.constant 0 : index
    %c0_2 = arith.constant 0 : index
    %1 = vector.load %arg2[%c0_1, %c0_2] : memref<128x128xbf16, #tpu.memory_space<vmem>>, vector<128x128xbf16>
    %cst = arith.constant dense<0.000000e+00> : vector<16x128xf32>
    %2 = tpu.matmul %0, %1, %cst {dimension_numbers = #tpu.dot_dimension_numbers<[1], [0], [0], [1], [0, 0, 1, 1], [], []>} : vector<16x128xbf16>, vector<128x128xbf16>, vector<16x128xf32> -> vector<16x128xf32>
    %c0_3 = arith.constant 0 : index
    %c0_4 = arith.constant 0 : index
    %3 = vector.load %arg3[%c0_3, %c0_4] : memref<1x128xf32, #tpu.memory_space<vmem>>, vector<1x128xf32>
    %4 = vector.broadcast %3 : vector<1x128xf32> to vector<16x128xf32>
    %5 = arith.addf %2, %4 : vector<16x128xf32>
    %cst_5 = arith.constant 1.000000e-01 : f32
    %6 = vector.broadcast %cst_5 : f32 to vector<16x128xf32>
    %7 = arith.mulf %6, %5 : vector<16x128xf32>
    %8 = arith.maximumf %5, %7 : vector<16x128xf32>
    %9 = arith.truncf %8 : vector<16x128xf32> to vector<16x128xbf16>
    %c0_6 = arith.constant 0 : index
    %c0_7 = arith.constant 0 : index
    %10 = vector.load %arg4[%c0_6, %c0_7] : memref<128x128xbf16, #tpu.memory_space<vmem>>, vector<128x128xbf16>
    %cst_8 = arith.constant dense<0.000000e+00> : vector<16x128xf32>
    %11 = tpu.matmul %9, %10, %cst_8 {dimension_numbers = #tpu.dot_dimension_numbers<[1], [0], [0], [1], [0, 0, 1, 1], [], []>} : vector<16x128xbf16>, vector<128x128xbf16>, vector<16x128xf32> -> vector<16x128xf32>
    %c0_9 = arith.constant 0 : index
    %c0_10 = arith.constant 0 : index
    %12 = vector.load %arg5[%c0_9, %c0_10] : memref<1x128xf32, #tpu.memory_space<vmem>>, vector<1x128xf32>
    %13 = vector.broadcast %12 : vector<1x128xf32> to vector<16x128xf32>
    %14 = arith.addf %11, %13 : vector<16x128xf32>
    %cst_11 = arith.constant 1.000000e-01 : f32
    %15 = vector.broadcast %cst_11 : f32 to vector<16x128xf32>
    %16 = arith.mulf %15, %14 : vector<16x128xf32>
    %17 = arith.maximumf %14, %16 : vector<16x128xf32>
    %18 = arith.truncf %17 : vector<16x128xf32> to vector<16x128xbf16>
    %c0_12 = arith.constant 0 : index
    %c0_13 = arith.constant 0 : index
    %19 = vector.load %arg6[%c0_12, %c0_13] : memref<128x128xbf16, #tpu.memory_space<vmem>>, vector<128x128xbf16>
    %cst_14 = arith.constant dense<0.000000e+00> : vector<16x128xf32>
    %20 = tpu.matmul %18, %19, %cst_14 {dimension_numbers = #tpu.dot_dimension_numbers<[1], [0], [0], [1], [0, 0, 1, 1], [], []>} : vector<16x128xbf16>, vector<128x128xbf16>, vector<16x128xf32> -> vector<16x128xf32>
    %c0_15 = arith.constant 0 : index
    %c0_16 = arith.constant 0 : index
    %21 = vector.load %arg7[%c0_15, %c0_16] : memref<1x128xf32, #tpu.memory_space<vmem>>, vector<1x128xf32>
    %22 = vector.broadcast %21 : vector<1x128xf32> to vector<16x128xf32>
    %23 = arith.addf %20, %22 : vector<16x128xf32>
    %cst_17 = arith.constant 1.000000e-01 : f32
    %24 = vector.broadcast %cst_17 : f32 to vector<16x128xf32>
    %25 = arith.mulf %24, %23 : vector<16x128xf32>
    %26 = arith.maximumf %23, %25 : vector<16x128xf32>
    %27 = arith.truncf %26 : vector<16x128xf32> to vector<16x128xbf16>
    %c0_18 = arith.constant 0 : index
    %c0_19 = arith.constant 0 : index
    %28 = vector.load %arg8[%c0_18, %c0_19] : memref<128x128xbf16, #tpu.memory_space<vmem>>, vector<128x128xbf16>
    %cst_20 = arith.constant dense<0.000000e+00> : vector<16x128xf32>
    %29 = tpu.matmul %27, %28, %cst_20 {dimension_numbers = #tpu.dot_dimension_numbers<[1], [0], [0], [1], [0, 0, 1, 1], [], []>} : vector<16x128xbf16>, vector<128x128xbf16>, vector<16x128xf32> -> vector<16x128xf32>
    %c0_21 = arith.constant 0 : index
    %c0_22 = arith.constant 0 : index
    %30 = vector.load %arg9[%c0_21, %c0_22] : memref<1x128xf32, #tpu.memory_space<vmem>>, vector<1x128xf32>
    %31 = vector.broadcast %30 : vector<1x128xf32> to vector<16x128xf32>
    %32 = arith.addf %29, %31 : vector<16x128xf32>
    %33 = arith.negf %32 : vector<16x128xf32>
    %34 = math.exp %33 : vector<16x128xf32>
    %cst_23 = arith.constant 1.000000e+00 : f32
    %35 = vector.broadcast %cst_23 : f32 to vector<16x128xf32>
    %36 = arith.addf %35, %34 : vector<16x128xf32>
    %37 = arith.divf %35, %36 : vector<16x128xf32>
    %c0_24 = arith.constant 0 : index
    %c0_25 = arith.constant 0 : index
    %38 = vector.load %arg10[%c0_24, %c0_25] : memref<16x128xf32, #tpu.memory_space<vmem>>, vector<16x128xf32>
    tpu.vector_store %arg10[%c0_24, %c0_25], %37 {strides = array<i32>} : memref<16x128xf32, #tpu.memory_space<vmem>>, vector<16x128xf32>,
    return
  }
  func.func @transform_0(%arg0: i32) -> (i32, i32) {
    %c0_i32 = arith.constant 0 : i32
    %c0_i32_0 = arith.constant 0 : i32
    return %arg0, %c0_i32 : i32, i32
  }
  func.func @transform_1(%arg0: i32) -> (i32, i32) {
    %c0_i32 = arith.constant 0 : i32
    %c0_i32_0 = arith.constant 0 : i32
    %c0_i32_1 = arith.constant 0 : i32
    return %c0_i32, %c0_i32_0 : i32, i32
  }
  func.func @transform_2(%arg0: i32) -> (i32, i32) {
    %c0_i32 = arith.constant 0 : i32
    %c0_i32_0 = arith.constant 0 : i32
    %c0_i32_1 = arith.constant 0 : i32
    return %c0_i32, %c0_i32_0 : i32, i32
  }
  func.func @transform_3(%arg0: i32) -> (i32, i32) {
    %c0_i32 = arith.constant 0 : i32
    %c0_i32_0 = arith.constant 0 : i32
    %c0_i32_1 = arith.constant 0 : i32
    return %c0_i32, %c0_i32_0 : i32, i32
  }
  func.func @transform_4(%arg0: i32) -> (i32, i32) {
    %c0_i32 = arith.constant 0 : i32
    %c0_i32_0 = arith.constant 0 : i32
    %c0_i32_1 = arith.constant 0 : i32
    return %c0_i32, %c0_i32_0 : i32, i32
  }
  func.func @transform_5(%arg0: i32) -> (i32, i32) {
    %c0_i32 = arith.constant 0 : i32
    %c0_i32_0 = arith.constant 0 : i32
    %c0_i32_1 = arith.constant 0 : i32
    return %c0_i32, %c0_i32_0 : i32, i32
  }
  func.func @transform_6(%arg0: i32) -> (i32, i32) {
    %c0_i32 = arith.constant 0 : i32
    %c0_i32_0 = arith.constant 0 : i32
    %c0_i32_1 = arith.constant 0 : i32
    return %c0_i32, %c0_i32_0 : i32, i32
  }
  func.func @transform_7(%arg0: i32) -> (i32, i32) {
    %c0_i32 = arith.constant 0 : i32
    %c0_i32_0 = arith.constant 0 : i32
    %c0_i32_1 = arith.constant 0 : i32
    return %c0_i32, %c0_i32_0 : i32, i32
  }
  func.func @transform_8(%arg0: i32) -> (i32, i32) {
    %c0_i32 = arith.constant 0 : i32
    %c0_i32_0 = arith.constant 0 : i32
    %c0_i32_1 = arith.constant 0 : i32
    return %c0_i32, %c0_i32_0 : i32, i32
  }
  func.func @transform_9(%arg0: i32) -> (i32, i32) {
    %c0_i32 = arith.constant 0 : i32
    %c0_i32_0 = arith.constant 0 : i32
    return %arg0, %c0_i32 : i32, i32
  }
}

module attributes {stable_mosaic.version = 11 : i64} {
  func.func @_mlp_kernel(%arg0: i32, %arg1: memref<16x128xbf16, #tpu.memory_space<vmem>>, %arg2: memref<128x128xbf16, #tpu.memory_space<vmem>>, %arg3: memref<1x128xf32, #tpu.memory_space<vmem>>, %arg4: memref<128x128xbf16, #tpu.memory_space<vmem>>, %arg5: memref<1x128xf32, #tpu.memory_space<vmem>>, %arg6: memref<128x128xbf16, #tpu.memory_space<vmem>>, %arg7: memref<1x128xf32, #tpu.memory_space<vmem>>, %arg8: memref<128x128xbf16, #tpu.memory_space<vmem>>, %arg9: memref<1x128xf32, #tpu.memory_space<vmem>>, %arg10: memref<16x128xf32, #tpu.memory_space<vmem>>) attributes {dimension_semantics = [#tpu.dimension_semantics<parallel>], iteration_bounds = array<i64: 1>, scalar_prefetch = 0 : i64, scratch_operands = 0 : i64, tpu.core_type = #tpu.core_type<tc>, window_params = [{transform_indices = @transform_0, window_bounds = array<i64: 16, 128>}, {pipeline_mode = #tpu.pipeline_mode<synchronous>, transform_indices = @transform_1, window_bounds = array<i64: 128, 128>}, {pipeline_mode = #tpu.pipeline_mode<synchronous>, transform_indices = @transform_2, window_bounds = array<i64: 1, 128>}, {pipeline_mode = #tpu.pipeline_mode<synchronous>, transform_indices = @transform_3, window_bounds = array<i64: 128, 128>}, {pipeline_mode = #tpu.pipeline_mode<synchronous>, transform_indices = @transform_4, window_bounds = array<i64: 1, 128>}, {pipeline_mode = #tpu.pipeline_mode<synchronous>, transform_indices = @transform_5, window_bounds = array<i64: 128, 128>}, {pipeline_mode = #tpu.pipeline_mode<synchronous>, transform_indices = @transform_6, window_bounds = array<i64: 1, 128>}, {pipeline_mode = #tpu.pipeline_mode<synchronous>, transform_indices = @transform_7, window_bounds = array<i64: 128, 128>}, {pipeline_mode = #tpu.pipeline_mode<synchronous>, transform_indices = @transform_8, window_bounds = array<i64: 1, 128>}, {transform_indices = @transform_9, window_bounds = array<i64: 16, 128>}]} {
    %c0 = arith.constant 0 : index
    %c0_0 = arith.constant 0 : index
    %0 = vector.load %arg1[%c0, %c0_0] : memref<16x128xbf16, #tpu.memory_space<vmem>>, vector<16x128xbf16>
    %c0_1 = arith.constant 0 : index
    %c0_2 = arith.constant 0 : index
    %1 = vector.load %arg2[%c0_1, %c0_2] : memref<128x128xbf16, #tpu.memory_space<vmem>>, vector<128x128xbf16>
    %cst = arith.constant dense<0.000000e+00> : vector<16x128xf32>
    %2 = tpu.matmul %0, %1, %cst {dimension_numbers = #tpu.dot_dimension_numbers<[1], [0], [0], [1], [0, 0, 1, 1], [], []>} : vector<16x128xbf16>, vector<128x128xbf16>, vector<16x128xf32> -> vector<16x128xf32>
    %c0_3 = arith.constant 0 : index
    %c0_4 = arith.constant 0 : index
    %3 = vector.load %arg3[%c0_3, %c0_4] : memref<1x128xf32, #tpu.memory_space<vmem>>, vector<1x128xf32>
    %4 = vector.broadcast %3 : vector<1x128xf32> to vector<16x128xf32>
    %5 = arith.addf %2, %4 : vector<16x128xf32>
    %cst_5 = arith.constant 1.000000e-01 : f32
    %6 = vector.broadcast %cst_5 : f32 to vector<16x128xf32>
    %7 = arith.mulf %6, %5 : vector<16x128xf32>
    %8 = arith.maximumf %5, %7 : vector<16x128xf32>
    %9 = arith.truncf %8 : vector<16x128xf32> to vector<16x128xbf16>
    %c0_6 = arith.constant 0 : index
    %c0_7 = arith.constant 0 : index
    %10 = vector.load %arg4[%c0_6, %c0_7] : memref<128x128xbf16, #tpu.memory_space<vmem>>, vector<128x128xbf16>
    %cst_8 = arith.constant dense<0.000000e+00> : vector<16x128xf32>
    %11 = tpu.matmul %9, %10, %cst_8 {dimension_numbers = #tpu.dot_dimension_numbers<[1], [0], [0], [1], [0, 0, 1, 1], [], []>} : vector<16x128xbf16>, vector<128x128xbf16>, vector<16x128xf32> -> vector<16x128xf32>
    %c0_9 = arith.constant 0 : index
    %c0_10 = arith.constant 0 : index
    %12 = vector.load %arg5[%c0_9, %c0_10] : memref<1x128xf32, #tpu.memory_space<vmem>>, vector<1x128xf32>
    %13 = vector.broadcast %12 : vector<1x128xf32> to vector<16x128xf32>
    %14 = arith.addf %11, %13 : vector<16x128xf32>
    %cst_11 = arith.constant 1.000000e-01 : f32
    %15 = vector.broadcast %cst_11 : f32 to vector<16x128xf32>
    %16 = arith.mulf %15, %14 : vector<16x128xf32>
    %17 = arith.maximumf %14, %16 : vector<16x128xf32>
    %18 = arith.truncf %17 : vector<16x128xf32> to vector<16x128xbf16>
    %c0_12 = arith.constant 0 : index
    %c0_13 = arith.constant 0 : index
    %19 = vector.load %arg6[%c0_12, %c0_13] : memref<128x128xbf16, #tpu.memory_space<vmem>>, vector<128x128xbf16>
    %cst_14 = arith.constant dense<0.000000e+00> : vector<16x128xf32>
    %20 = tpu.matmul %18, %19, %cst_14 {dimension_numbers = #tpu.dot_dimension_numbers<[1], [0], [0], [1], [0, 0, 1, 1], [], []>} : vector<16x128xbf16>, vector<128x128xbf16>, vector<16x128xf32> -> vector<16x128xf32>
    %c0_15 = arith.constant 0 : index
    %c0_16 = arith.constant 0 : index
    %21 = vector.load %arg7[%c0_15, %c0_16] : memref<1x128xf32, #tpu.memory_space<vmem>>, vector<1x128xf32>
    %22 = vector.broadcast %21 : vector<1x128xf32> to vector<16x128xf32>
    %23 = arith.addf %20, %22 : vector<16x128xf32>
    %cst_17 = arith.constant 1.000000e-01 : f32
    %24 = vector.broadcast %cst_17 : f32 to vector<16x128xf32>
    %25 = arith.mulf %24, %23 : vector<16x128xf32>
    %26 = arith.maximumf %23, %25 : vector<16x128xf32>
    %27 = arith.truncf %26 : vector<16x128xf32> to vector<16x128xbf16>
    %c0_18 = arith.constant 0 : index
    %c0_19 = arith.constant 0 : index
    %28 = vector.load %arg8[%c0_18, %c0_19] : memref<128x128xbf16, #tpu.memory_space<vmem>>, vector<128x128xbf16>
    %cst_20 = arith.constant dense<0.000000e+00> : vector<16x128xf32>
    %29 = tpu.matmul %27, %28, %cst_20 {dimension_numbers = #tpu.dot_dimension_numbers<[1], [0], [0], [1], [0, 0, 1, 1], [], []>} : vector<16x128xbf16>, vector<128x128xbf16>, vector<16x128xf32> -> vector<16x128xf32>
    %c0_21 = arith.constant 0 : index
    %c0_22 = arith.constant 0 : index
    %30 = vector.load %arg9[%c0_21, %c0_22] : memref<1x128xf32, #tpu.memory_space<vmem>>, vector<1x128xf32>
    %31 = vector.broadcast %30 : vector<1x128xf32> to vector<16x128xf32>
    %32 = arith.addf %29, %31 : vector<16x128xf32>
    %33 = arith.negf %32 : vector<16x128xf32>
    %34 = math.exp %33 : vector<16x128xf32>
    %cst_23 = arith.constant 1.000000e+00 : f32
    %35 = vector.broadcast %cst_23 : f32 to vector<16x128xf32>
    %36 = arith.addf %35, %34 : vector<16x128xf32>
    %37 = arith.divf %35, %36 : vector<16x128xf32>
    %c0_24 = arith.constant 0 : index
    %c0_25 = arith.constant 0 : index
    %38 = vector.load %arg10[%c0_24, %c0_25] : memref<16x128xf32, #tpu.memory_space<vmem>>, vector<16x128xf32>
    tpu.vector_store %arg10[%c0_24, %c0_25], %37 {strides = array<i32>} : memref<16x128xf32, #tpu.memory_space<vmem>>, vector<16x128xf32>,
    return
  }
  func.func @transform_0(%arg0: i32) -> (i32, i32) {
    %c0_i32 = arith.constant 0 : i32
    %c0_i32_0 = arith.constant 0 : i32
    return %arg0, %c0_i32 : i32, i32
  }
  func.func @transform_1(%arg0: i32) -> (i32, i32) {
    %c0_i32 = arith.constant 0 : i32
    %c0_i32_0 = arith.constant 0 : i32
    %c0_i32_1 = arith.constant 0 : i32
    return %c0_i32, %c0_i32_0 : i32, i32
  }
  func.func @transform_2(%arg0: i32) -> (i32, i32) {
    %c0_i32 = arith.constant 0 : i32
    %c0_i32_0 = arith.constant 0 : i32
    %c0_i32_1 = arith.constant 0 : i32
    return %c0_i32, %c0_i32_0 : i32, i32
  }
  func.func @transform_3(%arg0: i32) -> (i32, i32) {
    %c0_i32 = arith.constant 0 : i32
    %c0_i32_0 = arith.constant 0 : i32
    %c0_i32_1 = arith.constant 0 : i32
    return %c0_i32, %c0_i32_0 : i32, i32
  }
  func.func @transform_4(%arg0: i32) -> (i32, i32) {
    %c0_i32 = arith.constant 0 : i32
    %c0_i32_0 = arith.constant 0 : i32
    %c0_i32_1 = arith.constant 0 : i32
    return %c0_i32, %c0_i32_0 : i32, i32
  }
  func.func @transform_5(%arg0: i32) -> (i32, i32) {
    %c0_i32 = arith.constant 0 : i32
    %c0_i32_0 = arith.constant 0 : i32
    %c0_i32_1 = arith.constant 0 : i32
    return %c0_i32, %c0_i32_0 : i32, i32
  }
  func.func @transform_6(%arg0: i32) -> (i32, i32) {
    %c0_i32 = arith.constant 0 : i32
    %c0_i32_0 = arith.constant 0 : i32
    %c0_i32_1 = arith.constant 0 : i32
    return %c0_i32, %c0_i32_0 : i32, i32
  }
  func.func @transform_7(%arg0: i32) -> (i32, i32) {
    %c0_i32 = arith.constant 0 : i32
    %c0_i32_0 = arith.constant 0 : i32
    %c0_i32_1 = arith.constant 0 : i32
    return %c0_i32, %c0_i32_0 : i32, i32
  }
  func.func @transform_8(%arg0: i32) -> (i32, i32) {
    %c0_i32 = arith.constant 0 : i32
    %c0_i32_0 = arith.constant 0 : i32
    %c0_i32_1 = arith.constant 0 : i32
    return %c0_i32, %c0_i32_0 : i32, i32
  }
  func.func @transform_9(%arg0: i32) -> (i32, i32) {
    %c0_i32 = arith.constant 0 : i32
    %c0_i32_0 = arith.constant 0 : i32
    return %arg0, %c0_i32 : i32, i32
  }
}

</mosaic_0001>

<llo_original>
// kernel: tpu_custom_call.1
$region0: #{tpu_custom_call.1}
  #allocation0 [shape = 'u32[]', space=smem, size = 0x4, offset = 0x4, fixed_abs, tag = 'smem constant byte address 0x4 - core index']
  #allocation1 [shape = 'u32[72,128]{1,0:T(1,128)}', space=vmem, size = 0x9000, scoped, tag = 'internal scratch']
  %s0 = inlined_call_operand.hbm [shape: bf16[16,128], index: 0, kind: input, shape index: {}]
  %s1 = inlined_call_operand.hbm [shape: bf16[128,128], index: 1, kind: input, shape index: {}]
  %s2 = inlined_call_operand.vmem [shape: f32[1,128], index: 2, kind: input, shape index: {}]
  %s3 = inlined_call_operand.hbm [shape: bf16[128,128], index: 3, kind: input, shape index: {}]
  %s4 = inlined_call_operand.vmem [shape: f32[1,128], index: 4, kind: input, shape index: {}]
  %s5 = inlined_call_operand.hbm [shape: bf16[128,128], index: 5, kind: input, shape index: {}]
  %s6 = inlined_call_operand.vmem [shape: f32[1,128], index: 6, kind: input, shape index: {}]
  %s7 = inlined_call_operand.hbm [shape: bf16[128,128], index: 7, kind: input, shape index: {}]
  %s8 = inlined_call_operand.vmem [shape: f32[1,128], index: 8, kind: input, shape index: {}]
  %s9 = inlined_call_operand.hbm [shape: f32[16,128], index: 9, kind: output, shape index: {}]
  %s10 = sld [smem:[#allocation0]]
  $region66: #{tpu_custom_call.1} parent=0
    _
  %s12 = ssub.s32 1, %s10
  %s13 = scalar_select 0, %s12, %s10
  $region1: #{tpu_custom_call.1} parent=0
    #allocation2 [shape = 'u8[4096]{0}', space=vmem, size = 0x1000, scoped, tag = 'input window, operand 0, single buffered']
    #allocation3 [shape = 's32[1]{0}', space=sflag, size = 0x4, scoped, tag = 'scoped memory for tpu_custom_call.1']
    #allocation4 [shape = 's32[1]{0}', space=sflag, size = 0x4, scoped, tag = 'scoped memory for tpu_custom_call.1']
    #allocation5 [shape = 'u8[32768]{0}', space=vmem, size = 0x8000, scoped, tag = 'input window, operand 1, single buffered']
    #allocation6 [shape = 's32[1]{0}', space=sflag, size = 0x4, scoped, tag = 'scoped memory for tpu_custom_call.1']
    #allocation7 [shape = 'u8[32768]{0}', space=vmem, size = 0x8000, scoped, tag = 'input window, operand 3, single buffered']
    #allocation8 [shape = 'u8[32768]{0}', space=vmem, size = 0x8000, scoped, tag = 'input window, operand 5, single buffered']
    #allocation9 [shape = 's32[1]{0}', space=sflag, size = 0x4, scoped, tag = 'scoped memory for tpu_custom_call.1']
    #allocation10 [shape = 'u8[32768]{0}', space=vmem, size = 0x8000, scoped, tag = 'input window, operand 7, single buffered']
    #allocation11 [shape = 'u8[8192]{0}', space=vmem, size = 0x2000, scoped, tag = 'output window, operand 0, single buffered']
    %14 = vsyncpa [#allocation3], 0
    %15 = vsyncpa [#allocation6], 0
    %16 = vsyncpa [#allocation9], 0
    %17 = vsyncpa [#allocation4], 0
    // Predicated region
    $region2: #{tpu_custom_call.1} parent=1 // pred_check
      _
    $region3: #{tpu_custom_call.1} parent=1 // pred_check_branch
      %19 = sbr.rel (0) target = $region5
    $region4: #{tpu_custom_call.1} parent=1 // pred_region
      %21 = vsyncadd [#allocation3], 0
      %s22 = sshll.u32 %s0, 4
      %s23 = int_to_ptr.hbm [resolvable:$true] %s22
      %s24 = sshll.u32 [#allocation2], 4
      %s25 = int_to_ptr.vmem [resolvable:$true] %s24
      %30 = dma.hbm_to_vmem [thread:$0]  %s23, 128, %s25, [#allocation3], 64, 64, 4
    $region5: #{tpu_custom_call.1} parent=1 // pred_fallthru
      _
    // Predicated region
    $region6: #{tpu_custom_call.1} parent=1 // pred_check
      _
    $region7: #{tpu_custom_call.1} parent=1 // pred_check_branch
      %32 = sbr.rel (0) target = $region9
    $region8: #{tpu_custom_call.1} parent=1 // pred_region
      %34 = vsyncadd [#allocation6], 0
      %s35 = sshll.u32 %s1, 4
      %s36 = int_to_ptr.hbm [resolvable:$true] %s35
      %s37 = sshll.u32 [#allocation5], 4
      %s38 = int_to_ptr.vmem [resolvable:$true] %s37
      %43 = dma.hbm_to_vmem [thread:$0]  %s36, 1024, %s38, [#allocation6], 64, 64, 4
    $region9: #{tpu_custom_call.1} parent=1 // pred_fallthru
      _
    // Predicated region
    $region10: #{tpu_custom_call.1} parent=1 // pred_check
      _
    $region11: #{tpu_custom_call.1} parent=1 // pred_check_branch
      %45 = sbr.rel (0) target = $region13
    $region12: #{tpu_custom_call.1} parent=1 // pred_region
      _
    $region13: #{tpu_custom_call.1} parent=1 // pred_fallthru
      _
    // Predicated region
    $region14: #{tpu_custom_call.1} parent=1 // pred_check
      _
    $region15: #{tpu_custom_call.1} parent=1 // pred_check_branch
      %47 = sbr.rel (0) target = $region17
    $region16: #{tpu_custom_call.1} parent=1 // pred_region
      %49 = vsyncadd [#allocation6], 0
      %s50 = sshll.u32 %s3, 4
      %s51 = int_to_ptr.hbm [resolvable:$true] %s50
      %s52 = sshll.u32 [#allocation7], 4
      %s53 = int_to_ptr.vmem [resolvable:$true] %s52
      %58 = dma.hbm_to_vmem [thread:$0]  %s51, 1024, %s53, [#allocation6], 64, 64, 4
    $region17: #{tpu_custom_call.1} parent=1 // pred_fallthru
      _
    // Predicated region
    $region18: #{tpu_custom_call.1} parent=1 // pred_check
      _
    $region19: #{tpu_custom_call.1} parent=1 // pred_check_branch
      %60 = sbr.rel (0) target = $region21
    $region20: #{tpu_custom_call.1} parent=1 // pred_region
      _
    $region21: #{tpu_custom_call.1} parent=1 // pred_fallthru
      _
    // Predicated region
    $region22: #{tpu_custom_call.1} parent=1 // pred_check
      _
    $region23: #{tpu_custom_call.1} parent=1 // pred_check_branch
      %62 = sbr.rel (0) target = $region25
    $region24: #{tpu_custom_call.1} parent=1 // pred_region
      %64 = vsyncadd [#allocation9], 0
      %s65 = sshll.u32 %s5, 4
      %s66 = int_to_ptr.hbm [resolvable:$true] %s65
      %s67 = sshll.u32 [#allocation8], 4
      %s68 = int_to_ptr.vmem [resolvable:$true] %s67
      %73 = dma.hbm_to_vmem [thread:$0]  %s66, 1024, %s68, [#allocation9], 64, 64, 4
    $region25: #{tpu_custom_call.1} parent=1 // pred_fallthru
      _
    // Predicated region
    $region26: #{tpu_custom_call.1} parent=1 // pred_check
      _
    $region27: #{tpu_custom_call.1} parent=1 // pred_check_branch
      %75 = sbr.rel (0) target = $region29
    $region28: #{tpu_custom_call.1} parent=1 // pred_region
      _
    $region29: #{tpu_custom_call.1} parent=1 // pred_fallthru
      _
    // Predicated region
    $region30: #{tpu_custom_call.1} parent=1 // pred_check
      _
    $region31: #{tpu_custom_call.1} parent=1 // pred_check_branch
      %77 = sbr.rel (0) target = $region33
    $region32: #{tpu_custom_call.1} parent=1 // pred_region
      %79 = vsyncadd [#allocation9], 0
      %s80 = sshll.u32 %s7, 4
      %s81 = int_to_ptr.hbm [resolvable:$true] %s80
      %s82 = sshll.u32 [#allocation10], 4
      %s83 = int_to_ptr.vmem [resolvable:$true] %s82
      %88 = dma.hbm_to_vmem [thread:$0]  %s81, 1024, %s83, [#allocation9], 64, 64, 4
    $region33: #{tpu_custom_call.1} parent=1 // pred_fallthru
      _
    // Predicated region
    $region34: #{tpu_custom_call.1} parent=1 // pred_check
      _
    $region35: #{tpu_custom_call.1} parent=1 // pred_check_branch
      %90 = sbr.rel (0) target = $region37
    $region36: #{tpu_custom_call.1} parent=1 // pred_region
      _
    $region37: #{tpu_custom_call.1} parent=1 // pred_fallthru
      _
    // Predicated region
    $region38: #{tpu_custom_call.1} parent=1 // pred_check
      _
    $region39: #{tpu_custom_call.1} parent=1 // pred_check_branch
      %92 = sbr.rel (0) target = $region41
    $region40: #{tpu_custom_call.1} parent=1 // pred_region
      %94 = dma.done [#allocation3], 128
    $region41: #{tpu_custom_call.1} parent=1 // pred_fallthru
      _
    // Predicated region
    $region42: #{tpu_custom_call.1} parent=1 // pred_check
      _
    $region43: #{tpu_custom_call.1} parent=1 // pred_check_branch
      %96 = sbr.rel (0) target = $region45
    $region44: #{tpu_custom_call.1} parent=1 // pred_region
      %98 = dma.done [#allocation6], 1024
    $region45: #{tpu_custom_call.1} parent=1 // pred_fallthru
      _
    // Predicated region
    $region46: #{tpu_custom_call.1} parent=1 // pred_check
      _
    $region47: #{tpu_custom_call.1} parent=1 // pred_check_branch
      %100 = sbr.rel (0) target = $region49
    $region48: #{tpu_custom_call.1} parent=1 // pred_region
      %102 = dma.done [#allocation6], 1024
    $region49: #{tpu_custom_call.1} parent=1 // pred_fallthru
      _
    // Predicated region
    $region50: #{tpu_custom_call.1} parent=1 // pred_check
      _
    $region51: #{tpu_custom_call.1} parent=1 // pred_check_branch
      %104 = sbr.rel (0) target = $region53
    $region52: #{tpu_custom_call.1} parent=1 // pred_region
      %106 = dma.done [#allocation9], 1024
    $region53: #{tpu_custom_call.1} parent=1 // pred_fallthru
      _
    // Predicated region
    $region54: #{tpu_custom_call.1} parent=1 // pred_check
      _
    $region55: #{tpu_custom_call.1} parent=1 // pred_check_branch
      %108 = sbr.rel (0) target = $region57
    $region56: #{tpu_custom_call.1} parent=1 // pred_region
      %110 = dma.done [#allocation9], 1024
    $region57: #{tpu_custom_call.1} parent=1 // pred_fallthru
      _
    %v111 = vld [vmem:[#allocation2] sm:$0xf]
    %v112 = vld [vmem:[#allocation2 + $0x4] sm:$0xf]
    %v113 = vld [vmem:[#allocation5] sm:$0xf]
    %v114 = vld [vmem:[#allocation5 + $0x4] sm:$0xf]
    %v115 = vld [vmem:[#allocation5 + $0x8] sm:$0xf]
    %v116 = vld [vmem:[#allocation5 + $0xc] sm:$0xf]
    %v117 = vld [vmem:[#allocation5 + $0x10] sm:$0xf]
    %v118 = vld [vmem:[#allocation5 + $0x14] sm:$0xf]
    %v119 = vld [vmem:[#allocation5 + $0x18] sm:$0xf]
    %v120 = vld [vmem:[#allocation5 + $0x1c] sm:$0xf]
    %v121 = vld [vmem:[#allocation5 + $0x20] sm:$0xf]
    %v122 = vld [vmem:[#allocation5 + $0x24] sm:$0xf]
    %v123 = vld [vmem:[#allocation5 + $0x28] sm:$0xf]
    %v124 = vld [vmem:[#allocation5 + $0x2c] sm:$0xf]
    %v125 = vld [vmem:[#allocation5 + $0x30] sm:$0xf]
    %v126 = vld [vmem:[#allocation5 + $0x34] sm:$0xf]
    %v127 = vld [vmem:[#allocation5 + $0x38] sm:$0xf]
    %v128 = vld [vmem:[#allocation5 + $0x3c] sm:$0xf]
    %v129 = vld [vmem:[%s2] sm:$0x1]
    %v131 = vperm.slane %v129, 0
    %v135 = vunpack.c.l.b16 %v111
    %v136 = vunpack.c.l.b16 %v112
    %v137 = vpack.c.b16 %v136, %v135
    %v155 = vunpack.c.l.b16 %v113
    %v156 = vunpack.c.l.b16 %v114
    %v157 = vunpack.c.l.b16 %v115
    %v158 = vunpack.c.l.b16 %v116
    %v159 = vunpack.c.l.b16 %v117
    %v160 = vunpack.c.l.b16 %v118
    %v161 = vunpack.c.l.b16 %v119
    %v162 = vunpack.c.l.b16 %v120
    %v163 = vunpack.c.l.b16 %v121
    %v164 = vunpack.c.l.b16 %v122
    %v165 = vunpack.c.l.b16 %v123
    %v166 = vunpack.c.l.b16 %v124
    %v167 = vunpack.c.l.b16 %v125
    %v168 = vunpack.c.l.b16 %v126
    %v169 = vunpack.c.l.b16 %v127
    %v170 = vunpack.c.l.b16 %v128
    %v171 = vpack.c.b16 %v156, %v155
    %v172 = vpack.c.b16 %v158, %v157
    %v173 = vpack.c.b16 %v160, %v159
    %v174 = vpack.c.b16 %v162, %v161
    %v175 = vpack.c.b16 %v164, %v163
    %v176 = vpack.c.b16 %v166, %v165
    %v177 = vpack.c.b16 %v168, %v167
    %v178 = vpack.c.b16 %v170, %v169
    %187 = vmatpush.bf16.msra.mxu0 %v178
    %188 = vmatpush.bf16.msra.mxu0 %v177
    %189 = vmatpush.bf16.msra.mxu0 %v176
    %190 = vmatpush.bf16.msra.mxu0 %v175
    %191 = vmatpush.bf16.msra.mxu0 %v174
    %192 = vmatpush.bf16.msra.mxu0 %v173
    %193 = vmatpush.bf16.msra.mxu0 %v172
    %194 = vmatpush.bf16.msra.mxu0 %v171
    %195 = vmatmul.bf16.gmra.mxu0 %v137
    %v196 = vpop.f32.mrf.mxu0
    %v197 = vadd.f32 %v131, %v196
    %v198 = vpop.f32.mrf.mxu0
    %v199 = vadd.f32 %v131, %v198
    %200 = vdwg.mxu0
    %v201 = vmul.f32 %v197, 0.1
    %v202 = vmul.f32 %v199, 0.1
    %v203 = vmax.f32 %v197, %v201
    %v204 = vmax.f32 %v199, %v202
    %v205 = vpack.c.bf16 %v204, %v203
    %v206 = vld [vmem:[#allocation7] sm:$0xf]
    %v207 = vld [vmem:[#allocation7 + $0x4] sm:$0xf]
    %v208 = vld [vmem:[#allocation7 + $0x8] sm:$0xf]
    %v209 = vld [vmem:[#allocation7 + $0xc] sm:$0xf]
    %v210 = vld [vmem:[#allocation7 + $0x10] sm:$0xf]
    %v211 = vld [vmem:[#allocation7 + $0x14] sm:$0xf]
    %v212 = vld [vmem:[#allocation7 + $0x18] sm:$0xf]
    %v213 = vld [vmem:[#allocation7 + $0x1c] sm:$0xf]
    %v214 = vld [vmem:[#allocation7 + $0x20] sm:$0xf]
    %v215 = vld [vmem:[#allocation7 + $0x24] sm:$0xf]
    %v216 = vld [vmem:[#allocation7 + $0x28] sm:$0xf]
    %v217 = vld [vmem:[#allocation7 + $0x2c] sm:$0xf]
    %v218 = vld [vmem:[#allocation7 + $0x30] sm:$0xf]
    %v219 = vld [vmem:[#allocation7 + $0x34] sm:$0xf]
    %v220 = vld [vmem:[#allocation7 + $0x38] sm:$0xf]
    %v221 = vld [vmem:[#allocation7 + $0x3c] sm:$0xf]
    %v222 = vld [vmem:[%s4] sm:$0x1]
    %v224 = vperm.slane %v222, 0
    %v242 = vunpack.c.l.b16 %v206
    %v243 = vunpack.c.l.b16 %v207
    %v244 = vunpack.c.l.b16 %v208
    %v245 = vunpack.c.l.b16 %v209
    %v246 = vunpack.c.l.b16 %v210
    %v247 = vunpack.c.l.b16 %v211
    %v248 = vunpack.c.l.b16 %v212
    %v249 = vunpack.c.l.b16 %v213
    %v250 = vunpack.c.l.b16 %v214
    %v251 = vunpack.c.l.b16 %v215
    %v252 = vunpack.c.l.b16 %v216
    %v253 = vunpack.c.l.b16 %v217
    %v254 = vunpack.c.l.b16 %v218
    %v255 = vunpack.c.l.b16 %v219
    %v256 = vunpack.c.l.b16 %v220
    %v257 = vunpack.c.l.b16 %v221
    %v258 = vpack.c.b16 %v243, %v242
    %v259 = vpack.c.b16 %v245, %v244
    %v260 = vpack.c.b16 %v247, %v246
    %v261 = vpack.c.b16 %v249, %v248
    %v262 = vpack.c.b16 %v251, %v250
    %v263 = vpack.c.b16 %v253, %v252
    %v264 = vpack.c.b16 %v255, %v254
    %v265 = vpack.c.b16 %v257, %v256
    %274 = vmatpush.bf16.msra.mxu0 %v265
    %275 = vmatpush.bf16.msra.mxu0 %v264
    %276 = vmatpush.bf16.msra.mxu0 %v263
    %277 = vmatpush.bf16.msra.mxu0 %v262
    %278 = vmatpush.bf16.msra.mxu0 %v261
    %279 = vmatpush.bf16.msra.mxu0 %v260
    %280 = vmatpush.bf16.msra.mxu0 %v259
    %281 = vmatpush.bf16.msra.mxu0 %v258
    %282 = vmatmul.bf16.gmra.mxu0 %v205
    %v283 = vpop.f32.mrf.mxu0
    %v284 = vadd.f32 %v224, %v283
    %v285 = vpop.f32.mrf.mxu0
    %v286 = vadd.f32 %v224, %v285
    %287 = vdwg.mxu0
    %v288 = vmul.f32 %v284, 0.1
    %v289 = vmul.f32 %v286, 0.1
    %v290 = vmax.f32 %v284, %v288
    %v291 = vmax.f32 %v286, %v289
    %v292 = vpack.c.bf16 %v291, %v290
    %v293 = vld [vmem:[#allocation8] sm:$0xf]
    %v294 = vld [vmem:[#allocation8 + $0x4] sm:$0xf]
    %v295 = vld [vmem:[#allocation8 + $0x8] sm:$0xf]
    %v296 = vld [vmem:[#allocation8 + $0xc] sm:$0xf]
    %v297 = vld [vmem:[#allocation8 + $0x10] sm:$0xf]
    %v298 = vld [vmem:[#allocation8 + $0x14] sm:$0xf]
    %v299 = vld [vmem:[#allocation8 + $0x18] sm:$0xf]
    %v300 = vld [vmem:[#allocation8 + $0x1c] sm:$0xf]
    %v301 = vld [vmem:[#allocation8 + $0x20] sm:$0xf]
    %v302 = vld [vmem:[#allocation8 + $0x24] sm:$0xf]
    %v303 = vld [vmem:[#allocation8 + $0x28] sm:$0xf]
    %v304 = vld [vmem:[#allocation8 + $0x2c] sm:$0xf]
    %v305 = vld [vmem:[#allocation8 + $0x30] sm:$0xf]
    %v306 = vld [vmem:[#allocation8 + $0x34] sm:$0xf]
    %v307 = vld [vmem:[#allocation8 + $0x38] sm:$0xf]
    %v308 = vld [vmem:[#allocation8 + $0x3c] sm:$0xf]
    %v309 = vld [vmem:[%s6] sm:$0x1]
    %v311 = vperm.slane %v309, 0
    %v329 = vunpack.c.l.b16 %v293
    %v330 = vunpack.c.l.b16 %v294
    %v331 = vunpack.c.l.b16 %v295
    %v332 = vunpack.c.l.b16 %v296
    %v333 = vunpack.c.l.b16 %v297
    %v334 = vunpack.c.l.b16 %v298
    %v335 = vunpack.c.l.b16 %v299
    %v336 = vunpack.c.l.b16 %v300
    %v337 = vunpack.c.l.b16 %v301
    %v338 = vunpack.c.l.b16 %v302
    %v339 = vunpack.c.l.b16 %v303
    %v340 = vunpack.c.l.b16 %v304
    %v341 = vunpack.c.l.b16 %v305
    %v342 = vunpack.c.l.b16 %v306
    %v343 = vunpack.c.l.b16 %v307
    %v344 = vunpack.c.l.b16 %v308
    %v345 = vpack.c.b16 %v330, %v329
    %v346 = vpack.c.b16 %v332, %v331
    %v347 = vpack.c.b16 %v334, %v333
    %v348 = vpack.c.b16 %v336, %v335
    %v349 = vpack.c.b16 %v338, %v337
    %v350 = vpack.c.b16 %v340, %v339
    %v351 = vpack.c.b16 %v342, %v341
    %v352 = vpack.c.b16 %v344, %v343
    %361 = vmatpush.bf16.msra.mxu0 %v352
    %362 = vmatpush.bf16.msra.mxu0 %v351
    %363 = vmatpush.bf16.msra.mxu0 %v350
    %364 = vmatpush.bf16.msra.mxu0 %v349
    %365 = vmatpush.bf16.msra.mxu0 %v348
    %366 = vmatpush.bf16.msra.mxu0 %v347
    %367 = vmatpush.bf16.msra.mxu0 %v346
    %368 = vmatpush.bf16.msra.mxu0 %v345
    %369 = vmatmul.bf16.gmra.mxu0 %v292
    %v370 = vpop.f32.mrf.mxu0
    %v371 = vadd.f32 %v311, %v370
    %v372 = vpop.f32.mrf.mxu0
    %v373 = vadd.f32 %v311, %v372
    %374 = vdwg.mxu0
    %v375 = vmul.f32 %v371, 0.1
    %v376 = vmul.f32 %v373, 0.1
    %v377 = vmax.f32 %v371, %v375
    %v378 = vmax.f32 %v373, %v376
    %v379 = vpack.c.bf16 %v378, %v377
    %v380 = vld [vmem:[#allocation10] sm:$0xf]
    %v381 = vld [vmem:[#allocation10 + $0x4] sm:$0xf]
    %v382 = vld [vmem:[#allocation10 + $0x8] sm:$0xf]
    %v383 = vld [vmem:[#allocation10 + $0xc] sm:$0xf]
    %v384 = vld [vmem:[#allocation10 + $0x10] sm:$0xf]
    %v385 = vld [vmem:[#allocation10 + $0x14] sm:$0xf]
    %v386 = vld [vmem:[#allocation10 + $0x18] sm:$0xf]
    %v387 = vld [vmem:[#allocation10 + $0x1c] sm:$0xf]
    %v388 = vld [vmem:[#allocation10 + $0x20] sm:$0xf]
    %v389 = vld [vmem:[#allocation10 + $0x24] sm:$0xf]
    %v390 = vld [vmem:[#allocation10 + $0x28] sm:$0xf]
    %v391 = vld [vmem:[#allocation10 + $0x2c] sm:$0xf]
    %v392 = vld [vmem:[#allocation10 + $0x30] sm:$0xf]
    %v393 = vld [vmem:[#allocation10 + $0x34] sm:$0xf]
    %v394 = vld [vmem:[#allocation10 + $0x38] sm:$0xf]
    %v395 = vld [vmem:[#allocation10 + $0x3c] sm:$0xf]
    %v396 = vld [vmem:[%s8] sm:$0x1]
    %v398 = vperm.slane %v396, 0
    %v416 = vunpack.c.l.b16 %v380
    %v417 = vunpack.c.l.b16 %v381
    %v418 = vunpack.c.l.b16 %v382
    %v419 = vunpack.c.l.b16 %v383
    %v420 = vunpack.c.l.b16 %v384
    %v421 = vunpack.c.l.b16 %v385
    %v422 = vunpack.c.l.b16 %v386
    %v423 = vunpack.c.l.b16 %v387
    %v424 = vunpack.c.l.b16 %v388
    %v425 = vunpack.c.l.b16 %v389
    %v426 = vunpack.c.l.b16 %v390
    %v427 = vunpack.c.l.b16 %v391
    %v428 = vunpack.c.l.b16 %v392
    %v429 = vunpack.c.l.b16 %v393
    %v430 = vunpack.c.l.b16 %v394
    %v431 = vunpack.c.l.b16 %v395
    %v432 = vpack.c.b16 %v417, %v416
    %v433 = vpack.c.b16 %v419, %v418
    %v434 = vpack.c.b16 %v421, %v420
    %v435 = vpack.c.b16 %v423, %v422
    %v436 = vpack.c.b16 %v425, %v424
    %v437 = vpack.c.b16 %v427, %v426
    %v438 = vpack.c.b16 %v429, %v428
    %v439 = vpack.c.b16 %v431, %v430
    %448 = vmatpush.bf16.msra.mxu0 %v439
    %449 = vmatpush.bf16.msra.mxu0 %v438
    %450 = vmatpush.bf16.msra.mxu0 %v437
    %451 = vmatpush.bf16.msra.mxu0 %v436
    %452 = vmatpush.bf16.msra.mxu0 %v435
    %453 = vmatpush.bf16.msra.mxu0 %v434
    %454 = vmatpush.bf16.msra.mxu0 %v433
    %455 = vmatpush.bf16.msra.mxu0 %v432
    %456 = vmatmul.bf16.gmra.mxu0 %v379
    %v457 = vpop.f32.mrf.mxu0
    %v458 = vadd.f32 %v398, %v457
    %v459 = vpop.f32.mrf.mxu0
    %v460 = vadd.f32 %v398, %v459
    %461 = vdwg.mxu0
    %v462 = vxor.u32 %v458, 2147483648
    %v463 = vxor.u32 %v460, 2147483648
    %v464 = vmul.f32 %v462, 1.442695
    %v465 = vpow.pop %v464
    %v466 = vmul.f32 %v463, 1.442695
    %v467 = vpow.pop %v466
    %v468 = vadd.f32 %v465, 1.0
    %v469 = vadd.f32 %v467, 1.0
    %v470 = vrcp.pop %v468
    %v471 = vmul.f32 %v468, %v470
    %v472 = vsub.f32 1.0, %v471
    %v473 = vmul.f32 %v470, %v472
    %v474 = vadd.f32 %v470, %v473
    %vm475 = vweird.f32 %v468
    %vm476 = vweird.f32 %v470
    %vm477 = vmor %vm475, %vm476
    %v478 = vsel %vm477, %v470, %v474
    %v479 = vand.u32 2147483647, %v468
    %vm480 = vcmp.eq.f32.partialorder %v479, 8.507059e+37
    %v481 = vand.u32 %v468, 2147483648
    %v482 = vor.u32 1.1754944e-38, %v481
    %v483 = vsel %vm480, %v482, %v478
    %v484 = vmul.f32 1.0, %v483
    %v485 = vrcp.pop %v469
    %v486 = vmul.f32 %v469, %v485
    %v487 = vsub.f32 1.0, %v486
    %v488 = vmul.f32 %v485, %v487
    %v489 = vadd.f32 %v485, %v488
    %vm490 = vweird.f32 %v469
    %vm491 = vweird.f32 %v485
    %vm492 = vmor %vm490, %vm491
    %v493 = vsel %vm492, %v485, %v489
    %v494 = vand.u32 2147483647, %v469
    %vm495 = vcmp.eq.f32.partialorder %v494, 8.507059e+37
    %v496 = vand.u32 %v469, 2147483648
    %v497 = vor.u32 1.1754944e-38, %v496
    %v498 = vsel %vm495, %v497, %v493
    %v499 = vmul.f32 1.0, %v498
    %500 = vst [vmem:[#allocation11] sm:$0xff] %v484
    %501 = vst [vmem:[#allocation11 + $0x8] sm:$0xff] %v499
    // Predicated region
    $region58: #{tpu_custom_call.1} parent=1 // pred_check
      _
    $region59: #{tpu_custom_call.1} parent=1 // pred_check_branch
      %503 = sbr.rel (0) target = $region61
    $region60: #{tpu_custom_call.1} parent=1 // pred_region
      %505 = vsyncadd [#allocation4], 0
      %s506 = sshll.u32 [#allocation11], 4
      %s507 = int_to_ptr.vmem [resolvable:$true] %s506
      %s508 = sshll.u32 %s9, 4
      %s509 = int_to_ptr.hbm [resolvable:$true] %s508
      %514 = dma.vmem_to_hbm [thread:$0]  %s507, 256, %s509, [#allocation4], 128, 128, 8
    $region61: #{tpu_custom_call.1} parent=1 // pred_fallthru
      _
    // Predicated region
    $region62: #{tpu_custom_call.1} parent=1 // pred_check
      _
    $region63: #{tpu_custom_call.1} parent=1 // pred_check_branch
      %516 = sbr.rel (0) target = $region65
    $region64: #{tpu_custom_call.1} parent=1 // pred_region
      %518 = dma.done [#allocation4], 256
    $region65: #{tpu_custom_call.1} parent=1 // pred_fallthru
      _
    %519 = vsyncpa [#allocation3], 1
    %520 = vsyncpa [#allocation6], 1
    %521 = vsyncpa [#allocation9], 1
    %522 = vsyncpa [#allocation4], 1

// kernel: tpu_custom_call.1
$region0: #{tpu_custom_call.1}
  #allocation0 [shape = 'u32[]', space=smem, size = 0x4, offset = 0x4, fixed_abs, tag = 'smem constant byte address 0x4 - core index']
  #allocation1 [shape = 'u32[72,128]{1,0:T(1,128)}', space=vmem, size = 0x9000, scoped, tag = 'internal scratch']
  %s0 = inlined_call_operand.hbm [shape: bf16[16,128], index: 0, kind: input, shape index: {}]
  %s1 = inlined_call_operand.hbm [shape: bf16[128,128], index: 1, kind: input, shape index: {}]
  %s2 = inlined_call_operand.vmem [shape: f32[1,128], index: 2, kind: input, shape index: {}]
  %s3 = inlined_call_operand.hbm [shape: bf16[128,128], index: 3, kind: input, shape index: {}]
  %s4 = inlined_call_operand.vmem [shape: f32[1,128], index: 4, kind: input, shape index: {}]
  %s5 = inlined_call_operand.hbm [shape: bf16[128,128], index: 5, kind: input, shape index: {}]
  %s6 = inlined_call_operand.vmem [shape: f32[1,128], index: 6, kind: input, shape index: {}]
  %s7 = inlined_call_operand.hbm [shape: bf16[128,128], index: 7, kind: input, shape index: {}]
  %s8 = inlined_call_operand.vmem [shape: f32[1,128], index: 8, kind: input, shape index: {}]
  %s9 = inlined_call_operand.hbm [shape: f32[16,128], index: 9, kind: output, shape index: {}]
  %s10 = sld [smem:[#allocation0]]
  $region66: #{tpu_custom_call.1} parent=0
    _
  %s12 = ssub.s32 1, %s10
  %s13 = scalar_select 0, %s12, %s10
  $region1: #{tpu_custom_call.1} parent=0
    #allocation2 [shape = 'u8[4096]{0}', space=vmem, size = 0x1000, scoped, tag = 'input window, operand 0, single buffered']
    #allocation3 [shape = 's32[1]{0}', space=sflag, size = 0x4, scoped, tag = 'scoped memory for tpu_custom_call.1']
    #allocation4 [shape = 's32[1]{0}', space=sflag, size = 0x4, scoped, tag = 'scoped memory for tpu_custom_call.1']
    #allocation5 [shape = 'u8[32768]{0}', space=vmem, size = 0x8000, scoped, tag = 'input window, operand 1, single buffered']
    #allocation6 [shape = 's32[1]{0}', space=sflag, size = 0x4, scoped, tag = 'scoped memory for tpu_custom_call.1']
    #allocation7 [shape = 'u8[32768]{0}', space=vmem, size = 0x8000, scoped, tag = 'input window, operand 3, single buffered']
    #allocation8 [shape = 'u8[32768]{0}', space=vmem, size = 0x8000, scoped, tag = 'input window, operand 5, single buffered']
    #allocation9 [shape = 's32[1]{0}', space=sflag, size = 0x4, scoped, tag = 'scoped memory for tpu_custom_call.1']
    #allocation10 [shape = 'u8[32768]{0}', space=vmem, size = 0x8000, scoped, tag = 'input window, operand 7, single buffered']
    #allocation11 [shape = 'u8[8192]{0}', space=vmem, size = 0x2000, scoped, tag = 'output window, operand 0, single buffered']
    %14 = vsyncpa [#allocation3], 0
    %15 = vsyncpa [#allocation6], 0
    %16 = vsyncpa [#allocation9], 0
    %17 = vsyncpa [#allocation4], 0
    // Predicated region
    $region2: #{tpu_custom_call.1} parent=1 // pred_check
      _
    $region3: #{tpu_custom_call.1} parent=1 // pred_check_branch
      %19 = sbr.rel (0) target = $region5
    $region4: #{tpu_custom_call.1} parent=1 // pred_region
      %21 = vsyncadd [#allocation3], 0
      %s22 = sshll.u32 %s0, 4
      %s23 = int_to_ptr.hbm [resolvable:$true] %s22
      %s24 = sshll.u32 [#allocation2], 4
      %s25 = int_to_ptr.vmem [resolvable:$true] %s24
      %30 = dma.hbm_to_vmem [thread:$0]  %s23, 128, %s25, [#allocation3], 64, 64, 4
    $region5: #{tpu_custom_call.1} parent=1 // pred_fallthru
      _
    // Predicated region
    $region6: #{tpu_custom_call.1} parent=1 // pred_check
      _
    $region7: #{tpu_custom_call.1} parent=1 // pred_check_branch
      %32 = sbr.rel (0) target = $region9
    $region8: #{tpu_custom_call.1} parent=1 // pred_region
      %34 = vsyncadd [#allocation6], 0
      %s35 = sshll.u32 %s1, 4
      %s36 = int_to_ptr.hbm [resolvable:$true] %s35
      %s37 = sshll.u32 [#allocation5], 4
      %s38 = int_to_ptr.vmem [resolvable:$true] %s37
      %43 = dma.hbm_to_vmem [thread:$0]  %s36, 1024, %s38, [#allocation6], 64, 64, 4
    $region9: #{tpu_custom_call.1} parent=1 // pred_fallthru
      _
    // Predicated region
    $region10: #{tpu_custom_call.1} parent=1 // pred_check
      _
    $region11: #{tpu_custom_call.1} parent=1 // pred_check_branch
      %45 = sbr.rel (0) target = $region13
    $region12: #{tpu_custom_call.1} parent=1 // pred_region
      _
    $region13: #{tpu_custom_call.1} parent=1 // pred_fallthru
      _
    // Predicated region
    $region14: #{tpu_custom_call.1} parent=1 // pred_check
      _
    $region15: #{tpu_custom_call.1} parent=1 // pred_check_branch
      %47 = sbr.rel (0) target = $region17
    $region16: #{tpu_custom_call.1} parent=1 // pred_region
      %49 = vsyncadd [#allocation6], 0
      %s50 = sshll.u32 %s3, 4
      %s51 = int_to_ptr.hbm [resolvable:$true] %s50
      %s52 = sshll.u32 [#allocation7], 4
      %s53 = int_to_ptr.vmem [resolvable:$true] %s52
      %58 = dma.hbm_to_vmem [thread:$0]  %s51, 1024, %s53, [#allocation6], 64, 64, 4
    $region17: #{tpu_custom_call.1} parent=1 // pred_fallthru
      _
    // Predicated region
    $region18: #{tpu_custom_call.1} parent=1 // pred_check
      _
    $region19: #{tpu_custom_call.1} parent=1 // pred_check_branch
      %60 = sbr.rel (0) target = $region21
    $region20: #{tpu_custom_call.1} parent=1 // pred_region
      _
    $region21: #{tpu_custom_call.1} parent=1 // pred_fallthru
      _
    // Predicated region
    $region22: #{tpu_custom_call.1} parent=1 // pred_check
      _
    $region23: #{tpu_custom_call.1} parent=1 // pred_check_branch
      %62 = sbr.rel (0) target = $region25
    $region24: #{tpu_custom_call.1} parent=1 // pred_region
      %64 = vsyncadd [#allocation9], 0
      %s65 = sshll.u32 %s5, 4
      %s66 = int_to_ptr.hbm [resolvable:$true] %s65
      %s67 = sshll.u32 [#allocation8], 4
      %s68 = int_to_ptr.vmem [resolvable:$true] %s67
      %73 = dma.hbm_to_vmem [thread:$0]  %s66, 1024, %s68, [#allocation9], 64, 64, 4
    $region25: #{tpu_custom_call.1} parent=1 // pred_fallthru
      _
    // Predicated region
    $region26: #{tpu_custom_call.1} parent=1 // pred_check
      _
    $region27: #{tpu_custom_call.1} parent=1 // pred_check_branch
      %75 = sbr.rel (0) target = $region29
    $region28: #{tpu_custom_call.1} parent=1 // pred_region
      _
    $region29: #{tpu_custom_call.1} parent=1 // pred_fallthru
      _
    // Predicated region
    $region30: #{tpu_custom_call.1} parent=1 // pred_check
      _
    $region31: #{tpu_custom_call.1} parent=1 // pred_check_branch
      %77 = sbr.rel (0) target = $region33
    $region32: #{tpu_custom_call.1} parent=1 // pred_region
      %79 = vsyncadd [#allocation9], 0
      %s80 = sshll.u32 %s7, 4
      %s81 = int_to_ptr.hbm [resolvable:$true] %s80
      %s82 = sshll.u32 [#allocation10], 4
      %s83 = int_to_ptr.vmem [resolvable:$true] %s82
      %88 = dma.hbm_to_vmem [thread:$0]  %s81, 1024, %s83, [#allocation9], 64, 64, 4
    $region33: #{tpu_custom_call.1} parent=1 // pred_fallthru
      _
    // Predicated region
    $region34: #{tpu_custom_call.1} parent=1 // pred_check
      _
    $region35: #{tpu_custom_call.1} parent=1 // pred_check_branch
      %90 = sbr.rel (0) target = $region37
    $region36: #{tpu_custom_call.1} parent=1 // pred_region
      _
    $region37: #{tpu_custom_call.1} parent=1 // pred_fallthru
      _
    // Predicated region
    $region38: #{tpu_custom_call.1} parent=1 // pred_check
      _
    $region39: #{tpu_custom_call.1} parent=1 // pred_check_branch
      %92 = sbr.rel (0) target = $region41
    $region40: #{tpu_custom_call.1} parent=1 // pred_region
      %94 = dma.done [#allocation3], 128
    $region41: #{tpu_custom_call.1} parent=1 // pred_fallthru
      _
    // Predicated region
    $region42: #{tpu_custom_call.1} parent=1 // pred_check
      _
    $region43: #{tpu_custom_call.1} parent=1 // pred_check_branch
      %96 = sbr.rel (0) target = $region45
    $region44: #{tpu_custom_call.1} parent=1 // pred_region
      %98 = dma.done [#allocation6], 1024
    $region45: #{tpu_custom_call.1} parent=1 // pred_fallthru
      _
    // Predicated region
    $region46: #{tpu_custom_call.1} parent=1 // pred_check
      _
    $region47: #{tpu_custom_call.1} parent=1 // pred_check_branch
      %100 = sbr.rel (0) target = $region49
    $region48: #{tpu_custom_call.1} parent=1 // pred_region
      %102 = dma.done [#allocation6], 1024
    $region49: #{tpu_custom_call.1} parent=1 // pred_fallthru
      _
    // Predicated region
    $region50: #{tpu_custom_call.1} parent=1 // pred_check
      _
    $region51: #{tpu_custom_call.1} parent=1 // pred_check_branch
      %104 = sbr.rel (0) target = $region53
    $region52: #{tpu_custom_call.1} parent=1 // pred_region
      %106 = dma.done [#allocation9], 1024
    $region53: #{tpu_custom_call.1} parent=1 // pred_fallthru
      _
    // Predicated region
    $region54: #{tpu_custom_call.1} parent=1 // pred_check
      _
    $region55: #{tpu_custom_call.1} parent=1 // pred_check_branch
      %108 = sbr.rel (0) target = $region57
    $region56: #{tpu_custom_call.1} parent=1 // pred_region
      %110 = dma.done [#allocation9], 1024
    $region57: #{tpu_custom_call.1} parent=1 // pred_fallthru
      _
    %v111 = vld [vmem:[#allocation2] sm:$0xf]
    %v112 = vld [vmem:[#allocation2 + $0x4] sm:$0xf]
    %v113 = vld [vmem:[#allocation5] sm:$0xf]
    %v114 = vld [vmem:[#allocation5 + $0x4] sm:$0xf]
    %v115 = vld [vmem:[#allocation5 + $0x8] sm:$0xf]
    %v116 = vld [vmem:[#allocation5 + $0xc] sm:$0xf]
    %v117 = vld [vmem:[#allocation5 + $0x10] sm:$0xf]
    %v118 = vld [vmem:[#allocation5 + $0x14] sm:$0xf]
    %v119 = vld [vmem:[#allocation5 + $0x18] sm:$0xf]
    %v120 = vld [vmem:[#allocation5 + $0x1c] sm:$0xf]
    %v121 = vld [vmem:[#allocation5 + $0x20] sm:$0xf]
    %v122 = vld [vmem:[#allocation5 + $0x24] sm:$0xf]
    %v123 = vld [vmem:[#allocation5 + $0x28] sm:$0xf]
    %v124 = vld [vmem:[#allocation5 + $0x2c] sm:$0xf]
    %v125 = vld [vmem:[#allocation5 + $0x30] sm:$0xf]
    %v126 = vld [vmem:[#allocation5 + $0x34] sm:$0xf]
    %v127 = vld [vmem:[#allocation5 + $0x38] sm:$0xf]
    %v128 = vld [vmem:[#allocation5 + $0x3c] sm:$0xf]
    %v129 = vld [vmem:[%s2] sm:$0x1]
    %v131 = vperm.slane %v129, 0
    %v135 = vunpack.c.l.b16 %v111
    %v136 = vunpack.c.l.b16 %v112
    %v137 = vpack.c.b16 %v136, %v135
    %v155 = vunpack.c.l.b16 %v113
    %v156 = vunpack.c.l.b16 %v114
    %v157 = vunpack.c.l.b16 %v115
    %v158 = vunpack.c.l.b16 %v116
    %v159 = vunpack.c.l.b16 %v117
    %v160 = vunpack.c.l.b16 %v118
    %v161 = vunpack.c.l.b16 %v119
    %v162 = vunpack.c.l.b16 %v120
    %v163 = vunpack.c.l.b16 %v121
    %v164 = vunpack.c.l.b16 %v122
    %v165 = vunpack.c.l.b16 %v123
    %v166 = vunpack.c.l.b16 %v124
    %v167 = vunpack.c.l.b16 %v125
    %v168 = vunpack.c.l.b16 %v126
    %v169 = vunpack.c.l.b16 %v127
    %v170 = vunpack.c.l.b16 %v128
    %v171 = vpack.c.b16 %v156, %v155
    %v172 = vpack.c.b16 %v158, %v157
    %v173 = vpack.c.b16 %v160, %v159
    %v174 = vpack.c.b16 %v162, %v161
    %v175 = vpack.c.b16 %v164, %v163
    %v176 = vpack.c.b16 %v166, %v165
    %v177 = vpack.c.b16 %v168, %v167
    %v178 = vpack.c.b16 %v170, %v169
    %187 = vmatpush.bf16.msra.mxu0 %v178
    %188 = vmatpush.bf16.msra.mxu0 %v177
    %189 = vmatpush.bf16.msra.mxu0 %v176
    %190 = vmatpush.bf16.msra.mxu0 %v175
    %191 = vmatpush.bf16.msra.mxu0 %v174
    %192 = vmatpush.bf16.msra.mxu0 %v173
    %193 = vmatpush.bf16.msra.mxu0 %v172
    %194 = vmatpush.bf16.msra.mxu0 %v171
    %195 = vmatmul.bf16.gmra.mxu0 %v137
    %v196 = vpop.f32.mrf.mxu0
    %v197 = vadd.f32 %v131, %v196
    %v198 = vpop.f32.mrf.mxu0
    %v199 = vadd.f32 %v131, %v198
    %200 = vdwg.mxu0
    %v201 = vmul.f32 %v197, 0.1
    %v202 = vmul.f32 %v199, 0.1
    %v203 = vmax.f32 %v197, %v201
    %v204 = vmax.f32 %v199, %v202
    %v205 = vpack.c.bf16 %v204, %v203
    %v206 = vld [vmem:[#allocation7] sm:$0xf]
    %v207 = vld [vmem:[#allocation7 + $0x4] sm:$0xf]
    %v208 = vld [vmem:[#allocation7 + $0x8] sm:$0xf]
    %v209 = vld [vmem:[#allocation7 + $0xc] sm:$0xf]
    %v210 = vld [vmem:[#allocation7 + $0x10] sm:$0xf]
    %v211 = vld [vmem:[#allocation7 + $0x14] sm:$0xf]
    %v212 = vld [vmem:[#allocation7 + $0x18] sm:$0xf]
    %v213 = vld [vmem:[#allocation7 + $0x1c] sm:$0xf]
    %v214 = vld [vmem:[#allocation7 + $0x20] sm:$0xf]
    %v215 = vld [vmem:[#allocation7 + $0x24] sm:$0xf]
    %v216 = vld [vmem:[#allocation7 + $0x28] sm:$0xf]
    %v217 = vld [vmem:[#allocation7 + $0x2c] sm:$0xf]
    %v218 = vld [vmem:[#allocation7 + $0x30] sm:$0xf]
    %v219 = vld [vmem:[#allocation7 + $0x34] sm:$0xf]
    %v220 = vld [vmem:[#allocation7 + $0x38] sm:$0xf]
    %v221 = vld [vmem:[#allocation7 + $0x3c] sm:$0xf]
    %v222 = vld [vmem:[%s4] sm:$0x1]
    %v224 = vperm.slane %v222, 0
    %v242 = vunpack.c.l.b16 %v206
    %v243 = vunpack.c.l.b16 %v207
    %v244 = vunpack.c.l.b16 %v208
    %v245 = vunpack.c.l.b16 %v209
    %v246 = vunpack.c.l.b16 %v210
    %v247 = vunpack.c.l.b16 %v211
    %v248 = vunpack.c.l.b16 %v212
    %v249 = vunpack.c.l.b16 %v213
    %v250 = vunpack.c.l.b16 %v214
    %v251 = vunpack.c.l.b16 %v215
    %v252 = vunpack.c.l.b16 %v216
    %v253 = vunpack.c.l.b16 %v217
    %v254 = vunpack.c.l.b16 %v218
    %v255 = vunpack.c.l.b16 %v219
    %v256 = vunpack.c.l.b16 %v220
    %v257 = vunpack.c.l.b16 %v221
    %v258 = vpack.c.b16 %v243, %v242
    %v259 = vpack.c.b16 %v245, %v244
    %v260 = vpack.c.b16 %v247, %v246
    %v261 = vpack.c.b16 %v249, %v248
    %v262 = vpack.c.b16 %v251, %v250
    %v263 = vpack.c.b16 %v253, %v252
    %v264 = vpack.c.b16 %v255, %v254
    %v265 = vpack.c.b16 %v257, %v256
    %274 = vmatpush.bf16.msra.mxu0 %v265
    %275 = vmatpush.bf16.msra.mxu0 %v264
    %276 = vmatpush.bf16.msra.mxu0 %v263
    %277 = vmatpush.bf16.msra.mxu0 %v262
    %278 = vmatpush.bf16.msra.mxu0 %v261
    %279 = vmatpush.bf16.msra.mxu0 %v260
    %280 = vmatpush.bf16.msra.mxu0 %v259
    %281 = vmatpush.bf16.msra.mxu0 %v258
    %282 = vmatmul.bf16.gmra.mxu0 %v205
    %v283 = vpop.f32.mrf.mxu0
    %v284 = vadd.f32 %v224, %v283
    %v285 = vpop.f32.mrf.mxu0
    %v286 = vadd.f32 %v224, %v285
    %287 = vdwg.mxu0
    %v288 = vmul.f32 %v284, 0.1
    %v289 = vmul.f32 %v286, 0.1
    %v290 = vmax.f32 %v284, %v288
    %v291 = vmax.f32 %v286, %v289
    %v292 = vpack.c.bf16 %v291, %v290
    %v293 = vld [vmem:[#allocation8] sm:$0xf]
    %v294 = vld [vmem:[#allocation8 + $0x4] sm:$0xf]
    %v295 = vld [vmem:[#allocation8 + $0x8] sm:$0xf]
    %v296 = vld [vmem:[#allocation8 + $0xc] sm:$0xf]
    %v297 = vld [vmem:[#allocation8 + $0x10] sm:$0xf]
    %v298 = vld [vmem:[#allocation8 + $0x14] sm:$0xf]
    %v299 = vld [vmem:[#allocation8 + $0x18] sm:$0xf]
    %v300 = vld [vmem:[#allocation8 + $0x1c] sm:$0xf]
    %v301 = vld [vmem:[#allocation8 + $0x20] sm:$0xf]
    %v302 = vld [vmem:[#allocation8 + $0x24] sm:$0xf]
    %v303 = vld [vmem:[#allocation8 + $0x28] sm:$0xf]
    %v304 = vld [vmem:[#allocation8 + $0x2c] sm:$0xf]
    %v305 = vld [vmem:[#allocation8 + $0x30] sm:$0xf]
    %v306 = vld [vmem:[#allocation8 + $0x34] sm:$0xf]
    %v307 = vld [vmem:[#allocation8 + $0x38] sm:$0xf]
    %v308 = vld [vmem:[#allocation8 + $0x3c] sm:$0xf]
    %v309 = vld [vmem:[%s6] sm:$0x1]
    %v311 = vperm.slane %v309, 0
    %v329 = vunpack.c.l.b16 %v293
    %v330 = vunpack.c.l.b16 %v294
    %v331 = vunpack.c.l.b16 %v295
    %v332 = vunpack.c.l.b16 %v296
    %v333 = vunpack.c.l.b16 %v297
    %v334 = vunpack.c.l.b16 %v298
    %v335 = vunpack.c.l.b16 %v299
    %v336 = vunpack.c.l.b16 %v300
    %v337 = vunpack.c.l.b16 %v301
    %v338 = vunpack.c.l.b16 %v302
    %v339 = vunpack.c.l.b16 %v303
    %v340 = vunpack.c.l.b16 %v304
    %v341 = vunpack.c.l.b16 %v305
    %v342 = vunpack.c.l.b16 %v306
    %v343 = vunpack.c.l.b16 %v307
    %v344 = vunpack.c.l.b16 %v308
    %v345 = vpack.c.b16 %v330, %v329
    %v346 = vpack.c.b16 %v332, %v331
    %v347 = vpack.c.b16 %v334, %v333
    %v348 = vpack.c.b16 %v336, %v335
    %v349 = vpack.c.b16 %v338, %v337
    %v350 = vpack.c.b16 %v340, %v339
    %v351 = vpack.c.b16 %v342, %v341
    %v352 = vpack.c.b16 %v344, %v343
    %361 = vmatpush.bf16.msra.mxu0 %v352
    %362 = vmatpush.bf16.msra.mxu0 %v351
    %363 = vmatpush.bf16.msra.mxu0 %v350
    %364 = vmatpush.bf16.msra.mxu0 %v349
    %365 = vmatpush.bf16.msra.mxu0 %v348
    %366 = vmatpush.bf16.msra.mxu0 %v347
    %367 = vmatpush.bf16.msra.mxu0 %v346
    %368 = vmatpush.bf16.msra.mxu0 %v345
    %369 = vmatmul.bf16.gmra.mxu0 %v292
    %v370 = vpop.f32.mrf.mxu0
    %v371 = vadd.f32 %v311, %v370
    %v372 = vpop.f32.mrf.mxu0
    %v373 = vadd.f32 %v311, %v372
    %374 = vdwg.mxu0
    %v375 = vmul.f32 %v371, 0.1
    %v376 = vmul.f32 %v373, 0.1
    %v377 = vmax.f32 %v371, %v375
    %v378 = vmax.f32 %v373, %v376
    %v379 = vpack.c.bf16 %v378, %v377
    %v380 = vld [vmem:[#allocation10] sm:$0xf]
    %v381 = vld [vmem:[#allocation10 + $0x4] sm:$0xf]
    %v382 = vld [vmem:[#allocation10 + $0x8] sm:$0xf]
    %v383 = vld [vmem:[#allocation10 + $0xc] sm:$0xf]
    %v384 = vld [vmem:[#allocation10 + $0x10] sm:$0xf]
    %v385 = vld [vmem:[#allocation10 + $0x14] sm:$0xf]
    %v386 = vld [vmem:[#allocation10 + $0x18] sm:$0xf]
    %v387 = vld [vmem:[#allocation10 + $0x1c] sm:$0xf]
    %v388 = vld [vmem:[#allocation10 + $0x20] sm:$0xf]
    %v389 = vld [vmem:[#allocation10 + $0x24] sm:$0xf]
    %v390 = vld [vmem:[#allocation10 + $0x28] sm:$0xf]
    %v391 = vld [vmem:[#allocation10 + $0x2c] sm:$0xf]
    %v392 = vld [vmem:[#allocation10 + $0x30] sm:$0xf]
    %v393 = vld [vmem:[#allocation10 + $0x34] sm:$0xf]
    %v394 = vld [vmem:[#allocation10 + $0x38] sm:$0xf]
    %v395 = vld [vmem:[#allocation10 + $0x3c] sm:$0xf]
    %v396 = vld [vmem:[%s8] sm:$0x1]
    %v398 = vperm.slane %v396, 0
    %v416 = vunpack.c.l.b16 %v380
    %v417 = vunpack.c.l.b16 %v381
    %v418 = vunpack.c.l.b16 %v382
    %v419 = vunpack.c.l.b16 %v383
    %v420 = vunpack.c.l.b16 %v384
    %v421 = vunpack.c.l.b16 %v385
    %v422 = vunpack.c.l.b16 %v386
    %v423 = vunpack.c.l.b16 %v387
    %v424 = vunpack.c.l.b16 %v388
    %v425 = vunpack.c.l.b16 %v389
    %v426 = vunpack.c.l.b16 %v390
    %v427 = vunpack.c.l.b16 %v391
    %v428 = vunpack.c.l.b16 %v392
    %v429 = vunpack.c.l.b16 %v393
    %v430 = vunpack.c.l.b16 %v394
    %v431 = vunpack.c.l.b16 %v395
    %v432 = vpack.c.b16 %v417, %v416
    %v433 = vpack.c.b16 %v419, %v418
    %v434 = vpack.c.b16 %v421, %v420
    %v435 = vpack.c.b16 %v423, %v422
    %v436 = vpack.c.b16 %v425, %v424
    %v437 = vpack.c.b16 %v427, %v426
    %v438 = vpack.c.b16 %v429, %v428
    %v439 = vpack.c.b16 %v431, %v430
    %448 = vmatpush.bf16.msra.mxu0 %v439
    %449 = vmatpush.bf16.msra.mxu0 %v438
    %450 = vmatpush.bf16.msra.mxu0 %v437
    %451 = vmatpush.bf16.msra.mxu0 %v436
    %452 = vmatpush.bf16.msra.mxu0 %v435
    %453 = vmatpush.bf16.msra.mxu0 %v434
    %454 = vmatpush.bf16.msra.mxu0 %v433
    %455 = vmatpush.bf16.msra.mxu0 %v432
    %456 = vmatmul.bf16.gmra.mxu0 %v379
    %v457 = vpop.f32.mrf.mxu0
    %v458 = vadd.f32 %v398, %v457
    %v459 = vpop.f32.mrf.mxu0
    %v460 = vadd.f32 %v398, %v459
    %461 = vdwg.mxu0
    %v462 = vxor.u32 %v458, 2147483648
    %v463 = vxor.u32 %v460, 2147483648
    %v464 = vmul.f32 %v462, 1.442695
    %v465 = vpow.pop %v464
    %v466 = vmul.f32 %v463, 1.442695
    %v467 = vpow.pop %v466
    %v468 = vadd.f32 %v465, 1.0
    %v469 = vadd.f32 %v467, 1.0
    %v470 = vrcp.pop %v468
    %v471 = vmul.f32 %v468, %v470
    %v472 = vsub.f32 1.0, %v471
    %v473 = vmul.f32 %v470, %v472
    %v474 = vadd.f32 %v470, %v473
    %vm475 = vweird.f32 %v468
    %vm476 = vweird.f32 %v470
    %vm477 = vmor %vm475, %vm476
    %v478 = vsel %vm477, %v470, %v474
    %v479 = vand.u32 2147483647, %v468
    %vm480 = vcmp.eq.f32.partialorder %v479, 8.507059e+37
    %v481 = vand.u32 %v468, 2147483648
    %v482 = vor.u32 1.1754944e-38, %v481
    %v483 = vsel %vm480, %v482, %v478
    %v484 = vmul.f32 1.0, %v483
    %v485 = vrcp.pop %v469
    %v486 = vmul.f32 %v469, %v485
    %v487 = vsub.f32 1.0, %v486
    %v488 = vmul.f32 %v485, %v487
    %v489 = vadd.f32 %v485, %v488
    %vm490 = vweird.f32 %v469
    %vm491 = vweird.f32 %v485
    %vm492 = vmor %vm490, %vm491
    %v493 = vsel %vm492, %v485, %v489
    %v494 = vand.u32 2147483647, %v469
    %vm495 = vcmp.eq.f32.partialorder %v494, 8.507059e+37
    %v496 = vand.u32 %v469, 2147483648
    %v497 = vor.u32 1.1754944e-38, %v496
    %v498 = vsel %vm495, %v497, %v493
    %v499 = vmul.f32 1.0, %v498
    %500 = vst [vmem:[#allocation11] sm:$0xff] %v484
    %501 = vst [vmem:[#allocation11 + $0x8] sm:$0xff] %v499
    // Predicated region
    $region58: #{tpu_custom_call.1} parent=1 // pred_check
      _
    $region59: #{tpu_custom_call.1} parent=1 // pred_check_branch
      %503 = sbr.rel (0) target = $region61
    $region60: #{tpu_custom_call.1} parent=1 // pred_region
      %505 = vsyncadd [#allocation4], 0
      %s506 = sshll.u32 [#allocation11], 4
      %s507 = int_to_ptr.vmem [resolvable:$true] %s506
      %s508 = sshll.u32 %s9, 4
      %s509 = int_to_ptr.hbm [resolvable:$true] %s508
      %514 = dma.vmem_to_hbm [thread:$0]  %s507, 256, %s509, [#allocation4], 128, 128, 8
    $region61: #{tpu_custom_call.1} parent=1 // pred_fallthru
      _
    // Predicated region
    $region62: #{tpu_custom_call.1} parent=1 // pred_check
      _
    $region63: #{tpu_custom_call.1} parent=1 // pred_check_branch
      %516 = sbr.rel (0) target = $region65
    $region64: #{tpu_custom_call.1} parent=1 // pred_region
      %518 = dma.done [#allocation4], 256
    $region65: #{tpu_custom_call.1} parent=1 // pred_fallthru
      _
    %519 = vsyncpa [#allocation3], 1
    %520 = vsyncpa [#allocation6], 1
    %521 = vsyncpa [#allocation9], 1
    %522 = vsyncpa [#allocation4], 1

</llo_original>
